<compile_context>
chip_gen: v5e
topology: v5e:2x2
jax: 0.10.0
libtpu: 0.0.40
codegen_flags: <defaults>
</compile_context>

<pallas_src>
import jax
import jax.numpy as jnp
from jax.experimental import pallas as pl
from jax.experimental.pallas import tpu as pltpu

_LANE = 128                       # TPU lane width (last dim of every vreg)
_PER_BUFFER_BYTES = 2 * 1024 * 1024   # 2 MiB/buffer; x4 (in+out, double-buffered)
                                      # = 8 MiB, safe inside every chip's default
                                      # scoped VMEM (v5e 16 / v6e 32 / v7x 32 MiB).


def _sublane_min(dtype) -> int:
    """Minimum second-to-last tile granularity for a dtype (packing-aware)."""
    itemsize = jnp.dtype(dtype).itemsize
    return {4: 8, 2: 16, 1: 32}.get(itemsize, 8)


def _round_up(a: int, m: int) -> int:
    return ((a + m - 1) // m) * m


def _copy_kernel(x_ref, o_ref):
    """One VMEM tile: straight copy."""
    o_ref[...] = x_ref[...]


def identity_pallas(x: jax.Array) -> jax.Array:
    """Identity pass-through of `x` as a single-pass tiled Pallas copy."""
    # Degenerate cases: nothing to stream.
    if x.ndim == 0 or x.size == 0:
        return x

    orig_shape = x.shape
    dtype = x.dtype
    itemsize = jnp.dtype(dtype).itemsize
    sub_min = _sublane_min(dtype)

    # Natural collapsed-2D view (no data movement: minor dim is preserved).
    if x.ndim == 1:
        x2d = x.reshape(1, x.shape[0])
    else:
        x2d = x.reshape(-1, x.shape[-1])
    rows, cols = x2d.shape

    bytes_accessed = 2 * x.size * itemsize  # one read + one write, no padding

    if rows > 1:
        # Tile along rows; block last dim = full array last dim (exempt from
        # the 128-divisibility rule).  Partial last row-block is masked.
        if rows <= sub_min:
            block_rows = rows          # full dim -> exempt from divisibility
        else:
            # VMEM footprint of one row inside a tile (lanes pad to 128).
            vmem_row_bytes = _round_up(cols, _LANE) * itemsize
            budget_rows = max(
                sub_min,
                (_PER_BUFFER_BYTES // max(vmem_row_bytes, 1)) // sub_min * sub_min,
            )
            # Split into >= 2 blocks when possible so the "parallel" grid axis
            # actually shards across v7x's two TensorCores.
            half_rows = _round_up(pl.cdiv(rows, 2), sub_min)
            block_rows = min(budget_rows, half_rows)
        block_shape = (block_rows, cols)
        grid = (pl.cdiv(rows, block_rows),)
        index_map = lambda i: (i, 0)
    else:
        # 1-D input viewed as (1, N): tile along lanes instead.
        if cols <= _LANE:
            block_cols = cols          # full dim -> exempt
        else:
            budget_cols = max(
                _LANE, (_PER_BUFFER_BYTES // itemsize) // _LANE * _LANE)
            half_cols = _round_up(pl.cdiv(cols, 2), _LANE)
            block_cols = min(budget_cols, half_cols)
        block_shape = (1, block_cols)
        grid = (pl.cdiv(cols, block_cols),)
        index_map = lambda i: (0, i)

    out2d = pl.pallas_call(
        _copy_kernel,
        out_shape=jax.ShapeDtypeStruct((rows, cols), dtype),
        grid_spec=pltpu.PrefetchScalarGridSpec(
            num_scalar_prefetch=0,
            grid=grid,
            in_specs=[pl.BlockSpec(block_shape, index_map)],
            out_specs=pl.BlockSpec(block_shape, index_map),
        ),
        compiler_params=pltpu.CompilerParams(
            # Row/lane tiles are independent -> megacore-shardable on v7x.
            dimension_semantics=("parallel",),
        ),
        cost_estimate=pl.CostEstimate(
            flops=0, transcendentals=0, bytes_accessed=bytes_accessed),
        # Output is byte-identical to the input: alias it.
        input_output_aliases={0: 0},
    )(x2d)

    return out2d.reshape(orig_shape)


def base_style_layer_forward(x: jax.Array) -> jax.Array:
    """Mirrors BaseStyleLayer.forward: identity; build() is bookkeeping only."""
    # TODO(synk): build()'s lazy-build flag / logging.debug have no numerical
    #             effect and no JAX equivalent; stateless no-op here.
    return identity_pallas(x)


if __name__ == "__main__":
    key = jax.random.PRNGKey(0)
    fwd = jax.jit(base_style_layer_forward)

    ok = True

    # Main case: conv-style feature map (2, 4, 16, 16) f32.
    x = jax.random.normal(key, (2, 4, 16, 16), jnp.float32)
    out = jax.block_until_ready(fwd(x))
    ok &= (out.shape == x.shape) and (out.dtype == x.dtype)
    ok &= bool(jnp.array_equal(out, x))

    # Odd small shape: exercises the full-dim (exempt) block path.
    x2 = jax.random.normal(jax.random.PRNGKey(0), (5, 7), jnp.float32)
    out2 = jax.block_until_ready(fwd(x2))
    ok &= (out2.shape == x2.shape) and bool(jnp.array_equal(out2, x2))

    # Packed dtype: exercises the dtype-dependent sublane minimum.
    x3 = jax.random.normal(jax.random.PRNGKey(0), (2, 4, 16, 16),
                           jnp.float32).astype(jnp.bfloat16)
    out3 = jax.block_until_ready(fwd(x3))
    ok &= (out3.dtype == jnp.bfloat16) and bool(jnp.array_equal(out3, x3))

    assert ok, "identity forward must return x exactly"
    print("KERNEL_OK")
</pallas_src>

<mosaic_0001>
module attributes {stable_mosaic.version = 11 : i64} {
  func.func @_copy_kernel(%arg0: i32, %arg1: memref<64x16xf32, #tpu.memory_space<vmem>>, %arg2: memref<64x16xf32, #tpu.memory_space<vmem>>) attributes {dimension_semantics = [#tpu.dimension_semantics<parallel>], iteration_bounds = array<i64: 2>, scalar_prefetch = 0 : i64, scratch_operands = 0 : i64, tpu.core_type = #tpu.core_type<tc>, window_params = [{transform_indices = @transform_0, window_bounds = array<i64: 64, 16>}, {transform_indices = @transform_1, window_bounds = array<i64: 64, 16>}]} {
    %c0 = arith.constant 0 : index
    %c0_0 = arith.constant 0 : index
    %0 = vector.load %arg1[%c0, %c0_0] : memref<64x16xf32, #tpu.memory_space<vmem>>, vector<64x16xf32>
    %c0_1 = arith.constant 0 : index
    %c0_2 = arith.constant 0 : index
    %1 = vector.load %arg2[%c0_1, %c0_2] : memref<64x16xf32, #tpu.memory_space<vmem>>, vector<64x16xf32>
    tpu.vector_store %arg2[%c0_1, %c0_2], %0 {strides = array<i32>} : memref<64x16xf32, #tpu.memory_space<vmem>>, vector<64x16xf32>,
    return
  }
  func.func @transform_0(%arg0: i32) -> (i32, i32) {
    %c0_i32 = arith.constant 0 : i32
    %c0_i32_0 = arith.constant 0 : i32
    return %arg0, %c0_i32 : i32, i32
  }
  func.func @transform_1(%arg0: i32) -> (i32, i32) {
    %c0_i32 = arith.constant 0 : i32
    %c0_i32_0 = arith.constant 0 : i32
    return %arg0, %c0_i32 : i32, i32
  }
}

</mosaic_0001>

<llo_original>
// kernel: base_style_layer_forward.1
$region0: #{base_style_layer_forward.1}
  #allocation0 [shape = 'u32[]', space=smem, size = 0x4, offset = 0x4, fixed_abs, tag = 'smem constant byte address 0x4 - core index']
  #allocation1 [shape = 'u32[72,128]{1,0:T(1,128)}', space=vmem, size = 0x9000, scoped, tag = 'internal scratch']
  %s0 = inlined_call_operand.vmem [shape: f32[128,16], index: 0, kind: input, shape index: {}, may-alias: {0,1}]
  %s1 = inlined_call_operand.vmem [shape: f32[128,16], index: 1, kind: output, shape index: {}, may-alias: {0,1}]
  %s2 = sld [smem:[#allocation0]]
  $region37: #{base_style_layer_forward.1} parent=0
    _
  %s4 = ssub.s32 1, %s2
  %s5 = scalar_select 0, %s4, %s2
  loop: start=0, step=1, limit=4
  $region2: #{base_style_layer_forward.1} parent=0 // loop_pre_header
    _
  $region3: #{base_style_layer_forward.1} parent=0 // loop_header
    %s7 = sphi 0, %s11
    %p8 = scmp.ge.s32.totalorder %s7, 4
    %s17 = sphi 0, %s19
    %s20 = sphi 0, %s17
    %s21 = sphi 0, %s20
    %s37 = sphi 0, %s21
    %s43 = sphi 0, %s45
    %s46 = sphi 0, %s43
    %s47 = sphi 0, %s46
    %s63 = sphi 0, %s47
  $region4: #{base_style_layer_forward.1} parent=0 // loop_header_branch
    %10 = sbr.rel (%p8) target = $region8
  $region5: #{base_style_layer_forward.1} parent=0 // loop_body
    %s12 = ssub.s32 %s7, 1
    %s13 = ssub.s32 %s7, 2
    %s14 = sadd.s32 %s7, 1
    %s15 = ssub.s32 %s7, %s14
    %p16 = scmp.eq.s32.totalorder %s15, 0
    %s18 = sadd.s32 %s17, 1
    %s19 = scalar_select %p16, %s17, %s18
    %p22 = pneg %p16
    %p23 = scmp.eq.s32.totalorder %s7, 1
    %p24 = por %p22, %p23
    %p25 = scmp.ne.s32.totalorder %s17, %s20
    %p26 = scmp.eq.s32.totalorder %s7, 0
    %p27 = por %p25, %p26
    %p28 = scmp.ne.s32.totalorder %s17, %s20
    %p29 = scmp.eq.s32.totalorder %s12, 1
    %p30 = por %p28, %p29
    %p31 = scmp.ne.s32.totalorder %s20, %s21
    %p32 = scmp.eq.s32.totalorder %s12, 0
    %p33 = por %p31, %p32
    %p34 = scmp.ne.s32.totalorder %s20, %s21
    %p35 = scmp.eq.s32.totalorder %s13, 1
    %p36 = por %p34, %p35
    %p38 = scmp.ne.s32.totalorder %s21, %s37
    %p39 = scmp.eq.s32.totalorder %s13, 0
    %p40 = por %p38, %p39
    %s41 = ssub.s32 %s7, %s14
    %p42 = scmp.eq.s32.totalorder %s41, 0
    %s44 = sadd.s32 %s43, 1
    %s45 = scalar_select %p42, %s43, %s44
    %p48 = pneg %p42
    %p49 = scmp.eq.s32.totalorder %s7, 1
    %p50 = por %p48, %p49
    %p51 = scmp.ne.s32.totalorder %s43, %s46
    %p52 = scmp.eq.s32.totalorder %s7, 0
    %p53 = por %p51, %p52
    %p54 = scmp.ne.s32.totalorder %s43, %s46
    %p55 = scmp.eq.s32.totalorder %s12, 1
    %p56 = por %p54, %p55
    %p57 = scmp.ne.s32.totalorder %s46, %s47
    %p58 = scmp.eq.s32.totalorder %s12, 0
    %p59 = por %p57, %p58
    %p60 = scmp.ne.s32.totalorder %s46, %s47
    %p61 = scmp.eq.s32.totalorder %s13, 1
    %p62 = por %p60, %p61
    %p64 = scmp.ne.s32.totalorder %s47, %s63
    %p65 = scmp.eq.s32.totalorder %s13, 0
    %p66 = por %p64, %p65
    %p67 = scmp.le.s32.totalorder 1, %s7
    %p68 = scmp.lt.s32.totalorder %s7, 3
    %p69 = pnand %p67, %p68
    %p70 = pneg %p69
    // Predicated region
    $region9: #{base_style_layer_forward.1} parent=5 // pred_check
      _
    $region10: #{base_style_layer_forward.1} parent=5 // pred_check_branch
      %72 = sbr.rel (%p69) target = $region12
    $region11: #{base_style_layer_forward.1} parent=5 // pred_region
      %s73 = ssub.s32 %s7, 1
    $region12: #{base_style_layer_forward.1} parent=5 // pred_fallthru
      _
    %p74 = scmp.lt.s32.totalorder %s7, 2
    // Predicated region
    $region13: #{base_style_layer_forward.1} parent=5 // pred_check
      %p75 = pneg %p74
    $region14: #{base_style_layer_forward.1} parent=5 // pred_check_branch
      %77 = sbr.rel (%p75) target = $region16
    $region15: #{base_style_layer_forward.1} parent=5 // pred_region
      // Predicated region
      $region17: #{base_style_layer_forward.1} parent=15 // pred_check
        %p78 = pneg %p27
      $region18: #{base_style_layer_forward.1} parent=15 // pred_check_branch
        %80 = sbr.rel (%p78) target = $region20
      $region19: #{base_style_layer_forward.1} parent=15 // pred_region
        %s81 = smul.u32 8, %s7
        %p82 = scmp.lt.s32.totalorder %s81, 15
        %s83 = scalar_select %p82, %s81, 15
        %s84 = smul.addr %s83, 8
        %s85 = scalar_lea.vmem %s0, %s84
        %s86 = smul.u32 8, %s7
      $region20: #{base_style_layer_forward.1} parent=15 // pred_fallthru
        _
    $region16: #{base_style_layer_forward.1} parent=5 // pred_fallthru
      _
    %p87 = scmp.le.s32.totalorder 1, %s7
    %p88 = scmp.lt.s32.totalorder %s7, 3
    %p89 = pnand %p87, %p88
    %p90 = pneg %p89
    // Predicated region
    $region21: #{base_style_layer_forward.1} parent=5 // pred_check
      _
    $region22: #{base_style_layer_forward.1} parent=5 // pred_check_branch
      %92 = sbr.rel (%p89) target = $region24
    $region23: #{base_style_layer_forward.1} parent=5 // pred_region
      %s93 = ssub.s32 %s7, 1
      %s94 = smul.u32 8, %s12
      %p95 = scmp.lt.s32.totalorder %s94, 15
      %s96 = scalar_select %p95, %s94, 15
      %s97 = smul.addr %s96, 8
      %s98 = scalar_lea.vmem %s0, %s97
      %p99 = pneg %p33
      %p100 = pneg %p30
      %p101 = pneg %p59
      %p102 = pneg %p56
      %s103 = smul.u32 8, %s12
      %p104 = scmp.lt.s32.totalorder %s103, 15
      %s105 = scalar_select %p104, %s103, 15
      %s106 = smul.addr %s105, 8
      %s107 = scalar_lea.vmem %s1, %s106
      %s108 = smul.u32 8, %s12
      %p109 = scmp.lt.s32.totalorder %s108, 15
      %s110 = scalar_select %p109, %s108, 15
      %s111 = smul.addr %s110, 8
      %s112 = scalar_lea.vmem %s0, %s111
      %s113 = smul.u32 8, %s12
      %s114 = smul.u32 8, %s12
      %p115 = scmp.lt.s32.totalorder %s114, 15
      %s116 = scalar_select %p115, %s114, 15
      %s117 = smul.addr %s116, 8
      %s118 = scalar_lea.vmem %s1, %s117
      %s119 = smul.u32 8, %s12
      %v120 = vld [vmem:[%s112] sm:$0xff]
      %v121 = vld [vmem:[%s112 + $0x8] sm:$0xff]
      %v122 = vld [vmem:[%s112 + $0x10] sm:$0xff]
      %v123 = vld [vmem:[%s112 + $0x18] sm:$0xff]
      %v124 = vld [vmem:[%s112 + $0x20] sm:$0xff]
      %v125 = vld [vmem:[%s112 + $0x28] sm:$0xff]
      %v126 = vld [vmem:[%s112 + $0x30] sm:$0xff]
      %v127 = vld [vmem:[%s112 + $0x38] sm:$0xff]
      %vm128 = vcmask 130048
      %129 = vst.msk [vmem:[%s118] sm:$0xff] %vm128, %v120
      %130 = vst.msk [vmem:[%s118 + $0x8] sm:$0xff] %vm128, %v121
      %131 = vst.msk [vmem:[%s118 + $0x10] sm:$0xff] %vm128, %v122
      %132 = vst.msk [vmem:[%s118 + $0x18] sm:$0xff] %vm128, %v123
      %133 = vst.msk [vmem:[%s118 + $0x20] sm:$0xff] %vm128, %v124
      %134 = vst.msk [vmem:[%s118 + $0x28] sm:$0xff] %vm128, %v125
      %135 = vst.msk [vmem:[%s118 + $0x30] sm:$0xff] %vm128, %v126
      %136 = vst.msk [vmem:[%s118 + $0x38] sm:$0xff] %vm128, %v127
      %s137 = smul.u32 8, %s12
      %p138 = scmp.lt.s32.totalorder %s137, 15
      %s139 = scalar_select %p138, %s137, 15
      %s140 = smul.addr %s139, 8
      %s141 = scalar_lea.vmem %s1, %s140
      // Predicated region
      $region25: #{base_style_layer_forward.1} parent=23 // pred_check
        %p142 = pneg %p56
      $region26: #{base_style_layer_forward.1} parent=23 // pred_check_branch
        %144 = sbr.rel (%p142) target = $region28
      $region27: #{base_style_layer_forward.1} parent=23 // pred_region
        %s145 = smul.u32 8, %s12
      $region28: #{base_style_layer_forward.1} parent=23 // pred_fallthru
        _
    $region24: #{base_style_layer_forward.1} parent=5 // pred_fallthru
      _
    %p146 = scmp.le.s32.totalorder 2, %s7
    // Predicated region
    $region29: #{base_style_layer_forward.1} parent=5 // pred_check
      %p147 = pneg %p146
    $region30: #{base_style_layer_forward.1} parent=5 // pred_check_branch
      %149 = sbr.rel (%p147) target = $region32
    $region31: #{base_style_layer_forward.1} parent=5 // pred_region
      %s150 = ssub.s32 %s7, 2
      // Predicated region
      $region33: #{base_style_layer_forward.1} parent=31 // pred_check
        %p151 = pneg %p62
      $region34: #{base_style_layer_forward.1} parent=31 // pred_check_branch
        %153 = sbr.rel (%p151) target = $region36
      $region35: #{base_style_layer_forward.1} parent=31 // pred_region
        %s154 = smul.u32 8, %s13
        %p155 = scmp.lt.s32.totalorder %s154, 15
        %s156 = scalar_select %p155, %s154, 15
        %s157 = smul.addr %s156, 8
        %s158 = scalar_lea.vmem %s1, %s157
      $region36: #{base_style_layer_forward.1} parent=31 // pred_fallthru
        _
    $region32: #{base_style_layer_forward.1} parent=5 // pred_fallthru
      _
  $region6: #{base_style_layer_forward.1} parent=0 // loop_footer
    %s11 = sadd.s32 1, %s7
  $region7: #{base_style_layer_forward.1} parent=0 // loop_footer_branch
    %6 = sbr.rel target = $region3
  $region8: #{base_style_layer_forward.1} parent=0 // loop_exit
    _

</llo_original>
